<compile_context>
chip_gen: v6e
topology: v6e:2x2x1
jax: 0.10.0
libtpu: 0.0.40
codegen_flags: <defaults>
</compile_context>

<pallas_src>
import jax
import jax.numpy as jnp
from jax.experimental import pallas as pl
from jax.experimental.pallas import tpu as pltpu


def _gpr_forward_kernel(km_ref, ws_ref, sb_ref, out_ref):
    """Fused GPR forward for one frame: mean + composition baseline + std.

    km_ref : (N_at, M+1)     [K_tm | k_tt_diag]        (per-frame, gridded)
    ws_ref : (M+1, M+2)      [[Sigma, w, 0],[0,0,1]]   (resident constant)
    sb_ref : (N_sys, N_at+1) [Seg | Counts@W_comp]     (resident constant)
    out    : (N_sys, 2)      col 0 = energy, col 1 = std
    """
    slab = km_ref[...]
    ws_ext = ws_ref[...]
    sb = sb_ref[...]

    m = ws_ext.shape[0] - 1          # number of sparse points
    n_at = slab.shape[0]

    k_tm = slab[:, :m]               # (N_at, M)

    # --- MXU push 1: [K Sigma | e_atom | k_tt] in one matmul -----------------
    kw = jnp.dot(slab, ws_ext, preferred_element_type=jnp.float32)   # (N_at, M+2)

    # per-atom quadratic form k_i Sigma k_i^T (kept f32; cancellation-sensitive)
    quad = jnp.sum(kw[:, :m] * k_tm, axis=-1, keepdims=True)         # (N_at, 1)

    # [e_atom | var_atom] without a concatenate: subtract quad from lane 1 only.
    ev = kw[:, m:m + 2]                                               # (N_at, 2)
    lane = jax.lax.broadcasted_iota(jnp.int32, ev.shape, 1)
    ev = jnp.where(lane == 0, ev, ev - quad)

    # --- MXU push 2: atom -> structure sums ----------------------------------
    seg = sb[:, :n_at]                                                # (N_sys, N_at)
    base = sb[:, n_at:]                                               # (N_sys, 1)
    es = jnp.dot(seg, ev, preferred_element_type=jnp.float32)         # (N_sys, 2)

    # col 0: energy + composition baseline ; col 1: sqrt(clamped variance)
    lane2 = jax.lax.broadcasted_iota(jnp.int32, es.shape, 1)
    out_ref[...] = jnp.where(lane2 == 0, es + base,
                             jnp.sqrt(jnp.maximum(es, 0.0)))


def make_gpr_constants(sigma, w, seg, comp_counts, comp_w):
    """Pack fit-time / topology constants ONCE (not in the per-call path)."""
    m = sigma.shape[0]
    top = jnp.concatenate([sigma, w, jnp.zeros((m, 1), sigma.dtype)], axis=1)
    bottom = jnp.zeros((1, m + 2), sigma.dtype).at[0, m + 1].set(1.0)
    ws_ext = jnp.concatenate([top, bottom], axis=0)                   # (M+1, M+2)

    base = comp_counts @ comp_w                                       # (N_sys, 1)
    seg_base = jnp.concatenate([seg, base], axis=1)                   # (N_sys, N_at+1)
    return ws_ext, seg_base


def pack_frame_inputs(k_tm, k_tt_diag):
    """[K_tm | k_tt] per frame; in production upstream should emit this packed."""
    return jnp.concatenate([k_tm, k_tt_diag], axis=-1)                # (F, N_at, M+1)


@jax.jit
def gpr_forward(km_kt, ws_ext, seg_base):
    f, n_at, mp1 = km_kt.shape
    mp2 = ws_ext.shape[1]
    n_sys = seg_base.shape[0]

    out = pl.pallas_call(
        _gpr_forward_kernel,
        out_shape=jax.ShapeDtypeStruct((f, n_sys, 2), jnp.float32),
        grid=(f,),
        in_specs=[
            # per-frame slab, one block per grid step (frame dim squeezed)
            pl.BlockSpec((None, n_at, mp1), lambda i: (i, 0, 0)),
            # constants: same block every step -> resident, DMA'd once per call
            pl.BlockSpec((mp1, mp2), lambda i: (0, 0)),
            pl.BlockSpec((n_sys, n_at + 1), lambda i: (0, 0)),
        ],
        out_specs=pl.BlockSpec((None, n_sys, 2), lambda i: (i, 0, 0)),
        compiler_params=pltpu.CompilerParams(
            dimension_semantics=("parallel",)),   # uses both TCs on v7x
    )(km_kt, ws_ext, seg_base)

    energy = out[..., 0:1]   # (F, N_sys, 1)  predictions['energy']
    std = out[..., 1:2]      # (F, N_sys, 1)  predictions['std_energy']
    return energy, std


if __name__ == "__main__":
    key = jax.random.PRNGKey(0)

    # Small synthetic problem: 4 frames, each with 2 structures of [3, 5] atoms,
    # 32 sparse points, 4 atomic types.
    f = 4
    n_sys = 2
    atoms_per_sys = [3, 5]
    n_at = sum(atoms_per_sys)          # 8
    m = 32                             # sparse (active-set) points
    t = 4                              # atomic types

    k_key, w_key, c_key, cw_key, s_key, d_key = jax.random.split(key, 6)

    # Per-atom kernel values against sparse points, one per frame.
    k_tm = jax.random.normal(k_key, (f, n_at, m), dtype=jnp.float32) * 0.1

    # GPR weights (kernel_calculator.solver.weights).
    w = jax.random.normal(w_key, (m, 1), dtype=jnp.float32) * 0.05

    # One-hot segment matrix mapping atoms -> structure (sum_over_samples).
    seg = jnp.zeros((n_sys, n_at), dtype=jnp.float32)
    start = 0
    for s, na in enumerate(atoms_per_sys):
        seg = seg.at[s, start:start + na].set(1.0)
        start += na

    # Composition model: per-structure species counts and per-species weights.
    comp_counts = jnp.floor(
        jax.random.uniform(c_key, (n_sys, t), dtype=jnp.float32) * 3.0)
    comp_w = jax.random.normal(cw_key, (t, 1), dtype=jnp.float32)

    # Posterior covariance surrogate Sigma (SPD) used by predict_variance.
    a = jax.random.normal(s_key, (m, m), dtype=jnp.float32) / m
    sigma = a @ a.T + 1e-3 * jnp.eye(m, dtype=jnp.float32)

    # Diagonal of test-test kernel per frame, kept >= quadratic term so var >= 0.
    quad = jnp.sum((k_tm @ sigma) * k_tm, axis=-1, keepdims=True)     # (F, N_at, 1)
    k_tt_diag = (quad
                 + jax.random.uniform(d_key, (f, n_at, 1), dtype=jnp.float32)
                 + 0.1)

    # Constants packed once at "model init"; per-call slab packed once up front.
    ws_ext, seg_base = make_gpr_constants(sigma, w, seg, comp_counts, comp_w)
    km_kt = pack_frame_inputs(k_tm, k_tt_diag)

    energy, std = gpr_forward(km_kt, ws_ext, seg_base)
    jax.block_until_ready((energy, std))

    # Pure-JAX reference check.
    e_atom = k_tm @ w                                                 # (F, N_at, 1)
    e_ref = jnp.einsum("sa,fap->fsp", seg, e_atom) + comp_counts @ comp_w
    var_ref = jnp.einsum("sa,fap->fsp", seg, k_tt_diag - quad)
    std_ref = jnp.sqrt(jnp.maximum(var_ref, 0.0))

    assert jnp.allclose(energy, e_ref, atol=1e-5, rtol=1e-5)
    assert jnp.allclose(std, std_ref, atol=1e-5, rtol=1e-5)

    print("KERNEL_OK")
</pallas_src>

<mosaic_0001>
module attributes {stable_mosaic.version = 11 : i64} {
  func.func @_gpr_forward_kernel(%arg0: i32, %arg1: memref<1x8x33xf32, #tpu.memory_space<vmem>>, %arg2: memref<33x34xf32, #tpu.memory_space<vmem>>, %arg3: memref<2x9xf32, #tpu.memory_space<vmem>>, %arg4: memref<1x2x2xf32, #tpu.memory_space<vmem>>) attributes {dimension_semantics = [#tpu.dimension_semantics<parallel>], iteration_bounds = array<i64: 4>, scalar_prefetch = 0 : i64, scratch_operands = 0 : i64, tpu.core_type = #tpu.core_type<tc>, window_params = [{transform_indices = @transform_0, window_bounds = array<i64: 1, 8, 33>}, {pipeline_mode = #tpu.pipeline_mode<synchronous>, transform_indices = @transform_1, window_bounds = array<i64: 33, 34>}, {pipeline_mode = #tpu.pipeline_mode<synchronous>, transform_indices = @transform_2, window_bounds = array<i64: 2, 9>}, {transform_indices = @transform_3, window_bounds = array<i64: 1, 2, 2>}]} {
    %c0 = arith.constant 0 : index
    %c0_0 = arith.constant 0 : index
    %c0_1 = arith.constant 0 : index
    %0 = vector.load %arg1[%c0, %c0_0, %c0_1] : memref<1x8x33xf32, #tpu.memory_space<vmem>>, vector<1x8x33xf32>
    %1 = vector.shape_cast %0 : vector<1x8x33xf32> to vector<8x33xf32>
    %c0_2 = arith.constant 0 : index
    %c0_3 = arith.constant 0 : index
    %2 = vector.load %arg2[%c0_2, %c0_3] : memref<33x34xf32, #tpu.memory_space<vmem>>, vector<33x34xf32>
    %c0_4 = arith.constant 0 : index
    %c0_5 = arith.constant 0 : index
    %3 = vector.load %arg3[%c0_4, %c0_5] : memref<2x9xf32, #tpu.memory_space<vmem>>, vector<2x9xf32>
    %4 = vector.extract_strided_slice %1 {offsets = [0, 0], sizes = [8, 32], strides = [1, 1]} : vector<8x33xf32> to vector<8x32xf32>
    %cst = arith.constant dense<0.000000e+00> : vector<8x34xf32>
    %5 = tpu.matmul %1, %2, %cst {dimension_numbers = #tpu.dot_dimension_numbers<[1], [0], [0], [1], [0, 0, 1, 1], [], []>} : vector<8x33xf32>, vector<33x34xf32>, vector<8x34xf32> -> vector<8x34xf32>
    %6 = vector.extract_strided_slice %5 {offsets = [0, 0], sizes = [8, 32], strides = [1, 1]} : vector<8x34xf32> to vector<8x32xf32>
    %7 = arith.mulf %6, %4 : vector<8x32xf32>
    %cst_6 = arith.constant dense<0.000000e+00> : vector<8xf32>
    %8 = vector.multi_reduction <add>, %7, %cst_6 [1] : vector<8x32xf32> to vector<8xf32>
    %9 = vector.shape_cast %8 : vector<8xf32> to vector<8x1xf32>
    %10 = vector.extract_strided_slice %5 {offsets = [0, 32], sizes = [8, 2], strides = [1, 1]} : vector<8x34xf32> to vector<8x2xf32>
    %11 = tpu.iota {dimensions = array<i32: 1>} : vector<8x2xi32>
    %c0_i32 = arith.constant 0 : i32
    %12 = vector.broadcast %c0_i32 : i32 to vector<8x2xi32>
    %13 = arith.cmpi eq, %11, %12 : vector<8x2xi32>
    %14 = vector.broadcast %9 : vector<8x1xf32> to vector<8x2xf32>
    %15 = arith.subf %10, %14 : vector<8x2xf32>
    %16 = arith.select %13, %10, %15 : vector<8x2xi1>, vector<8x2xf32>
    %17 = vector.extract_strided_slice %3 {offsets = [0, 0], sizes = [2, 8], strides = [1, 1]} : vector<2x9xf32> to vector<2x8xf32>
    %18 = vector.extract_strided_slice %3 {offsets = [0, 8], sizes = [2, 1], strides = [1, 1]} : vector<2x9xf32> to vector<2x1xf32>
    %cst_7 = arith.constant dense<0.000000e+00> : vector<2x2xf32>
    %19 = tpu.matmul %17, %16, %cst_7 {dimension_numbers = #tpu.dot_dimension_numbers<[1], [0], [0], [1], [0, 0, 1, 1], [], []>} : vector<2x8xf32>, vector<8x2xf32>, vector<2x2xf32> -> vector<2x2xf32>
    %20 = tpu.iota {dimensions = array<i32: 1>} : vector<2x2xi32>
    %c0_i32_8 = arith.constant 0 : i32
    %21 = vector.broadcast %c0_i32_8 : i32 to vector<2x2xi32>
    %22 = arith.cmpi eq, %20, %21 : vector<2x2xi32>
    %23 = vector.broadcast %18 : vector<2x1xf32> to vector<2x2xf32>
    %24 = arith.addf %19, %23 : vector<2x2xf32>
    %cst_9 = arith.constant 0.000000e+00 : f32
    %25 = vector.broadcast %cst_9 : f32 to vector<2x2xf32>
    %26 = arith.maximumf %19, %25 : vector<2x2xf32>
    %27 = math.sqrt %26 : vector<2x2xf32>
    %28 = arith.select %22, %24, %27 : vector<2x2xi1>, vector<2x2xf32>
    %c0_10 = arith.constant 0 : index
    %c0_11 = arith.constant 0 : index
    %c0_12 = arith.constant 0 : index
    %29 = vector.load %arg4[%c0_10, %c0_11, %c0_12] : memref<1x2x2xf32, #tpu.memory_space<vmem>>, vector<1x2x2xf32>
    %30 = vector.shape_cast %29 : vector<1x2x2xf32> to vector<2x2xf32>
    %31 = vector.shape_cast %28 : vector<2x2xf32> to vector<1x2x2xf32>
    tpu.vector_store %arg4[%c0_10, %c0_11, %c0_12], %31 {strides = array<i32>} : memref<1x2x2xf32, #tpu.memory_space<vmem>>, vector<1x2x2xf32>,
    return
  }
  func.func @transform_0(%arg0: i32) -> (i32, i32, i32) {
    %c0_i32 = arith.constant 0 : i32
    %c0_i32_0 = arith.constant 0 : i32
    %c0_i32_1 = arith.constant 0 : i32
    return %arg0, %c0_i32, %c0_i32_0 : i32, i32, i32
  }
  func.func @transform_1(%arg0: i32) -> (i32, i32) {
    %c0_i32 = arith.constant 0 : i32
    %c0_i32_0 = arith.constant 0 : i32
    %c0_i32_1 = arith.constant 0 : i32
    return %c0_i32, %c0_i32_0 : i32, i32
  }
  func.func @transform_2(%arg0: i32) -> (i32, i32) {
    %c0_i32 = arith.constant 0 : i32
    %c0_i32_0 = arith.constant 0 : i32
    %c0_i32_1 = arith.constant 0 : i32
    return %c0_i32, %c0_i32_0 : i32, i32
  }
  func.func @transform_3(%arg0: i32) -> (i32, i32, i32) {
    %c0_i32 = arith.constant 0 : i32
    %c0_i32_0 = arith.constant 0 : i32
    %c0_i32_1 = arith.constant 0 : i32
    return %arg0, %c0_i32, %c0_i32_0 : i32, i32, i32
  }
}

</mosaic_0001>

<llo_original>
// kernel: gpr_forward.1
$region0: #{gpr_forward.1}
  #allocation0 [shape = 'u32[]', space=smem, size = 0x4, offset = 0x4, fixed_abs, tag = 'smem constant byte address 0x4 - core index']
  #allocation1 [shape = 'u32[144,128]{1,0:T(1,128)}', space=vmem, size = 0x12000, scoped, tag = 'internal scratch']
  %s0 = inlined_call_operand.hbm [shape: f32[4,8,33], index: 0, kind: input, shape index: {}]
  %s1 = inlined_call_operand.hbm [shape: f32[33,34], index: 1, kind: input, shape index: {}]
  %s2 = inlined_call_operand.vmem [shape: f32[2,9], index: 2, kind: input, shape index: {}]
  %s3 = inlined_call_operand.vmem [shape: f32[4,2,2], index: 3, kind: output, shape index: {}]
  %s4 = sld [smem:[#allocation0]]
  $region53: #{gpr_forward.1} parent=0
    _
  %s6 = ssub.s32 1, %s4
  %s7 = scalar_select 0, %s6, %s4
  $region1: #{gpr_forward.1} parent=0
    #allocation2 [shape = 'u8[8192]{0}', space=vmem, size = 0x2000, scoped, tag = 'input window, operand 0']
    #allocation3 [shape = 's32[2]{0}', space=sflag, size = 0x8, scoped, tag = 'scoped memory for gpr_forward.1']
    #allocation4 [shape = 'u8[20480]{0}', space=vmem, size = 0x5000, scoped, tag = 'input window, operand 1, single buffered']
    #allocation5 [shape = 's32[1]{0}', space=sflag, size = 0x4, scoped, tag = 'scoped memory for gpr_forward.1']
    %8 = vsyncpa [#allocation3], 0
    %s9 = scalar_lea.sflag [#allocation3], 1
    %10 = vsyncpa %s9, 0
    %11 = vsyncpa [#allocation5], 0
    loop: start=0, step=1, limit=6
    $region2: #{gpr_forward.1} parent=1 // loop_pre_header
      _
    $region3: #{gpr_forward.1} parent=1 // loop_header
      %s13 = sphi 0, %s17
      %p14 = scmp.ge.s32.totalorder %s13, 6
      %s23 = sphi 0, %s25
      %s26 = sphi 0, %s23
      %s27 = sphi 0, %s26
      %s43 = sphi 0, %s27
      %s47 = sphi 0, %s47
      %s49 = sphi 0, %s47
      %s50 = sphi 0, %s49
      %s64 = sphi 0, %s50
      %s68 = sphi 0, %s68
      %s70 = sphi 0, %s68
      %s71 = sphi 0, %s70
      %s85 = sphi 0, %s71
      %s91 = sphi 0, %s93
      %s94 = sphi 0, %s91
      %s95 = sphi 0, %s94
      %s111 = sphi 0, %s95
    $region4: #{gpr_forward.1} parent=1 // loop_header_branch
      %16 = sbr.rel (%p14) target = $region8
    $region5: #{gpr_forward.1} parent=1 // loop_body
      %s18 = ssub.s32 %s13, 1
      %s19 = ssub.s32 %s13, 2
      %s20 = sadd.s32 %s13, 1
      %s21 = ssub.s32 %s13, %s20
      %p22 = scmp.eq.s32.totalorder %s21, 0
      %s24 = sadd.s32 %s23, 1
      %s25 = scalar_select %p22, %s23, %s24
      %p28 = pneg %p22
      %p29 = scmp.eq.s32.totalorder %s13, 3
      %p30 = por %p28, %p29
      %p31 = scmp.ne.s32.totalorder %s23, %s26
      %p32 = scmp.eq.s32.totalorder %s13, 0
      %p33 = por %p31, %p32
      %p34 = scmp.ne.s32.totalorder %s23, %s26
      %p35 = scmp.eq.s32.totalorder %s18, 3
      %p36 = por %p34, %p35
      %p37 = scmp.ne.s32.totalorder %s26, %s27
      %p38 = scmp.eq.s32.totalorder %s18, 0
      %p39 = por %p37, %p38
      %p40 = scmp.ne.s32.totalorder %s26, %s27
      %p41 = scmp.eq.s32.totalorder %s19, 3
      %p42 = por %p40, %p41
      %p44 = scmp.ne.s32.totalorder %s27, %s43
      %p45 = scmp.eq.s32.totalorder %s19, 0
      %p46 = por %p44, %p45
      %s48 = sadd.s32 %s47, 1
      %p51 = scmp.eq.s32.totalorder %s13, 3
      %p52 = scmp.ne.s32.totalorder %s47, %s49
      %p53 = scmp.eq.s32.totalorder %s13, 0
      %p54 = por %p52, %p53
      %p55 = scmp.ne.s32.totalorder %s47, %s49
      %p56 = scmp.eq.s32.totalorder %s18, 3
      %p57 = por %p55, %p56
      %p58 = scmp.ne.s32.totalorder %s49, %s50
      %p59 = scmp.eq.s32.totalorder %s18, 0
      %p60 = por %p58, %p59
      %p61 = scmp.ne.s32.totalorder %s49, %s50
      %p62 = scmp.eq.s32.totalorder %s19, 3
      %p63 = por %p61, %p62
      %p65 = scmp.ne.s32.totalorder %s50, %s64
      %p66 = scmp.eq.s32.totalorder %s19, 0
      %p67 = por %p65, %p66
      %s69 = sadd.s32 %s68, 1
      %p72 = scmp.eq.s32.totalorder %s13, 3
      %p73 = scmp.ne.s32.totalorder %s68, %s70
      %p74 = scmp.eq.s32.totalorder %s13, 0
      %p75 = por %p73, %p74
      %p76 = scmp.ne.s32.totalorder %s68, %s70
      %p77 = scmp.eq.s32.totalorder %s18, 3
      %p78 = por %p76, %p77
      %p79 = scmp.ne.s32.totalorder %s70, %s71
      %p80 = scmp.eq.s32.totalorder %s18, 0
      %p81 = por %p79, %p80
      %p82 = scmp.ne.s32.totalorder %s70, %s71
      %p83 = scmp.eq.s32.totalorder %s19, 3
      %p84 = por %p82, %p83
      %p86 = scmp.ne.s32.totalorder %s71, %s85
      %p87 = scmp.eq.s32.totalorder %s19, 0
      %p88 = por %p86, %p87
      %s89 = ssub.s32 %s13, %s20
      %p90 = scmp.eq.s32.totalorder %s89, 0
      %s92 = sadd.s32 %s91, 1
      %s93 = scalar_select %p90, %s91, %s92
      %p96 = pneg %p90
      %p97 = scmp.eq.s32.totalorder %s13, 3
      %p98 = por %p96, %p97
      %p99 = scmp.ne.s32.totalorder %s91, %s94
      %p100 = scmp.eq.s32.totalorder %s13, 0
      %p101 = por %p99, %p100
      %p102 = scmp.ne.s32.totalorder %s91, %s94
      %p103 = scmp.eq.s32.totalorder %s18, 3
      %p104 = por %p102, %p103
      %p105 = scmp.ne.s32.totalorder %s94, %s95
      %p106 = scmp.eq.s32.totalorder %s18, 0
      %p107 = por %p105, %p106
      %p108 = scmp.ne.s32.totalorder %s94, %s95
      %p109 = scmp.eq.s32.totalorder %s19, 3
      %p110 = por %p108, %p109
      %p112 = scmp.ne.s32.totalorder %s95, %s111
      %p113 = scmp.eq.s32.totalorder %s19, 0
      %p114 = por %p112, %p113
      %p115 = scmp.le.s32.totalorder 1, %s13
      %p116 = scmp.lt.s32.totalorder %s13, 5
      %p117 = pnand %p115, %p116
      %p118 = pneg %p117
      // Predicated region
      $region9: #{gpr_forward.1} parent=5 // pred_check
        _
      $region10: #{gpr_forward.1} parent=5 // pred_check_branch
        %120 = sbr.rel (%p117) target = $region12
      $region11: #{gpr_forward.1} parent=5 // pred_region
        %s121 = ssub.s32 %s13, 1
        // Predicated region
        $region13: #{gpr_forward.1} parent=11 // pred_check
          %p122 = pneg %p60
        $region14: #{gpr_forward.1} parent=11 // pred_check_branch
          %124 = sbr.rel (%p122) target = $region16
        $region15: #{gpr_forward.1} parent=11 // pred_region
          %s126 = ssub.s32 640, 640
          %127 = vsyncadd [#allocation5], %s126
          %s128 = sshll.u32 [#allocation4], 4
          %s129 = int_to_ptr.vmem [resolvable:$true] %s128
          %134 = dma.hbm_to_vmem [thread:$0]  %s1, 640, %s129, [#allocation5], 128, 128, 8
        $region16: #{gpr_forward.1} parent=11 // pred_fallthru
          _
        // Predicated region
        $region17: #{gpr_forward.1} parent=11 // pred_check
          %p135 = pneg %p81
        $region18: #{gpr_forward.1} parent=11 // pred_check_branch
          %137 = sbr.rel (%p135) target = $region20
        $region19: #{gpr_forward.1} parent=11 // pred_region
          _
        $region20: #{gpr_forward.1} parent=11 // pred_fallthru
          _
      $region12: #{gpr_forward.1} parent=5 // pred_fallthru
        _
      %p138 = scmp.lt.s32.totalorder %s13, 4
      // Predicated region
      $region21: #{gpr_forward.1} parent=5 // pred_check
        %p139 = pneg %p138
      $region22: #{gpr_forward.1} parent=5 // pred_check_branch
        %141 = sbr.rel (%p139) target = $region24
      $region23: #{gpr_forward.1} parent=5 // pred_region
        // Predicated region
        $region25: #{gpr_forward.1} parent=23 // pred_check
          %p142 = pneg %p33
        $region26: #{gpr_forward.1} parent=23 // pred_check_branch
          %144 = sbr.rel (%p142) target = $region28
        $region27: #{gpr_forward.1} parent=23 // pred_region
          %s145 = sand.u32 %s23, 1
          %s146 = scalar_lea.sflag [#allocation3], %s145
          %s147 = sand.u32 %s23, 1
          %s148 = smul.addr %s147, 8
          %s149 = scalar_lea.vmem [#allocation2], %s148
          %s151 = ssub.s32 128, 128
          %152 = vsyncadd %s146, %s151
          %s153 = smul.addr %s13, 128
          %s154 = scalar_lea.hbm %s0, %s153
          %s156 = sshll.u32 %s149, 4
          %s157 = int_to_ptr.vmem [resolvable:$true] %s156
          %159 = dma.hbm_to_vmem [thread:$0]  %s154, 128, %s157, %s146
        $region28: #{gpr_forward.1} parent=23 // pred_fallthru
          _
      $region24: #{gpr_forward.1} parent=5 // pred_fallthru
        _
      %p160 = scmp.le.s32.totalorder 1, %s13
      %p161 = scmp.lt.s32.totalorder %s13, 5
      %p162 = pnand %p160, %p161
      %p163 = pneg %p162
      // Predicated region
      $region29: #{gpr_forward.1} parent=5 // pred_check
        _
      $region30: #{gpr_forward.1} parent=5 // pred_check_branch
        %165 = sbr.rel (%p162) target = $region32
      $region31: #{gpr_forward.1} parent=5 // pred_region
        %s166 = ssub.s32 %s13, 1
        %s167 = sand.u32 %s26, 1
        %s168 = scalar_lea.sflag [#allocation3], %s167
        %s169 = sand.u32 %s26, 1
        %s170 = smul.addr %s169, 8
        %s171 = scalar_lea.vmem [#allocation2], %s170
        // Predicated region
        $region33: #{gpr_forward.1} parent=31 // pred_check
          %p172 = pneg %p39
        $region34: #{gpr_forward.1} parent=31 // pred_check_branch
          %174 = sbr.rel (%p172) target = $region36
        $region35: #{gpr_forward.1} parent=31 // pred_region
          %175 = dma.done %s168, 128
        $region36: #{gpr_forward.1} parent=31 // pred_fallthru
          _
        // Predicated region
        $region37: #{gpr_forward.1} parent=31 // pred_check
          %p176 = pneg %p60
        $region38: #{gpr_forward.1} parent=31 // pred_check_branch
          %178 = sbr.rel (%p176) target = $region40
        $region39: #{gpr_forward.1} parent=31 // pred_region
          %179 = dma.done [#allocation5], 640
        $region40: #{gpr_forward.1} parent=31 // pred_fallthru
          _
        %s180 = sand.u32 %s26, 1
        %s181 = scalar_lea.sflag [#allocation3], %s180
        %s182 = sand.u32 %s26, 1
        %s183 = smul.addr %s182, 8
        %s184 = scalar_lea.vmem [#allocation2], %s183
        %p185 = pneg %p39
        %p186 = pneg %p36
        %p187 = pneg %p60
        %p188 = pneg %p57
        %p189 = pneg %p81
        %p190 = pneg %p78
        %p191 = pneg %p107
        %p192 = pneg %p104
        %p193 = scmp.lt.s32.totalorder %s18, 3
        %s194 = scalar_select %p193, %s18, 3
        %s195 = smul.addr %s194, 2
        %s196 = scalar_lea.vmem %s3, %s195
        %p197 = scmp.lt.s32.totalorder %s18, 3
        %s198 = scalar_select %p197, %s18, 3
        %s199 = smul.addr %s198, 2
        %s200 = scalar_lea.vmem %s3, %s199
        %v201 = vld [vmem:[%s171] sm:$0xff]
        %v202 = vld [vmem:[#allocation4] sm:$0xff]
        %v203 = vld [vmem:[#allocation4 + $0x8] sm:$0xff]
        %v204 = vld [vmem:[#allocation4 + $0x10] sm:$0xff]
        %v205 = vld [vmem:[#allocation4 + $0x18] sm:$0xff]
        %v206 = vld [vmem:[#allocation4 + $0x20] sm:$0x1]
        %v207 = vld [vmem:[%s2] sm:$0x3]
        %vm208 = vcmask 269312
        %v210 = vsel %vm208, %v201, 0
        %vm212 = vcmask 1040384
        %v214 = vsel %vm212, %v206, 0
        %216 = vmatprep.subr.mxu0 0.0
        %217 = vmatpush1.msra.mxu0 0.0
        %218 = vmatprep.subr.mxu0 0.0
        %219 = vmatpush1.msra.mxu0 0.0
        %220 = vmatprep.subr.mxu0 0.0
        %221 = vmatpush1.msra.mxu0 0.0
        %222 = vmatprep.subr.mxu0 0.0
        %223 = vmatpush1.msra.mxu0 0.0
        %224 = vmatprep.subr.mxu0 0.0
        %225 = vmatpush1.msra.mxu0 0.0
        %226 = vmatprep.subr.mxu0 0.0
        %227 = vmatpush1.msra.mxu0 0.0
        %228 = vmatprep.subr.mxu0 0.0
        %229 = vmatpush1.msra.mxu0 0.0
        %230 = vmatprep.subr.mxu0 0.0
        %231 = vmatpush1.msra.mxu0 0.0
        %232 = vmatprep.subr.mxu0 0.0
        %233 = vmatpush1.msra.mxu0 0.0
        %234 = vmatprep.subr.mxu0 0.0
        %235 = vmatpush1.msra.mxu0 0.0
        %236 = vmatprep.subr.mxu0 0.0
        %237 = vmatpush1.msra.mxu0 0.0
        %238 = vmatprep.subr.mxu0 0.0
        %239 = vmatpush1.msra.mxu0 %v214
        %240 = vmatprep.subr.mxu0 0.0
        %241 = vmatpush1.msra.mxu0 %v205
        %242 = vmatprep.subr.mxu0 0.0
        %243 = vmatpush1.msra.mxu0 %v204
        %244 = vmatprep.subr.mxu0 0.0
        %245 = vmatpush1.msra.mxu0 %v203
        %246 = vmatprep.subr.mxu0 0.0
        %247 = vmatpush1.msra.mxu0 %v202
        %248 = vmatprep.subr.mxu0 0.0
        %249 = vmatpush2.msra.mxu0 0.0
        %250 = vmatprep.subr.mxu0 0.0
        %251 = vmatpush2.msra.mxu0 0.0
        %252 = vmatprep.subr.mxu0 0.0
        %253 = vmatpush2.msra.mxu0 0.0
        %254 = vmatprep.subr.mxu0 0.0
        %255 = vmatpush2.msra.mxu0 0.0
        %256 = vmatprep.subr.mxu0 0.0
        %257 = vmatpush2.msra.mxu0 0.0
        %258 = vmatprep.subr.mxu0 0.0
        %259 = vmatpush2.msra.mxu0 0.0
        %260 = vmatprep.subr.mxu0 0.0
        %261 = vmatpush2.msra.mxu0 0.0
        %262 = vmatprep.subr.mxu0 0.0
        %263 = vmatpush2.msra.mxu0 0.0
        %264 = vmatprep.subr.mxu0 0.0
        %265 = vmatpush2.msra.mxu0 0.0
        %266 = vmatprep.subr.mxu0 0.0
        %267 = vmatpush2.msra.mxu0 0.0
        %268 = vmatprep.subr.mxu0 0.0
        %269 = vmatpush2.msra.mxu0 0.0
        %270 = vmatprep.subr.mxu0 0.0
        %271 = vmatpush2.msra.mxu0 0.0
        %272 = vmatprep.subr.mxu0 0.0
        %273 = vmatpush2.msra.mxu0 0.0
        %274 = vmatprep.subr.mxu0 0.0
        %275 = vmatpush2.msra.mxu0 0.0
        %276 = vmatprep.subr.mxu0 0.0
        %277 = vmatpush2.msra.mxu0 0.0
        %278 = vmatprep.subr.mxu0 0.0
        %279 = vmatpush2.msra.mxu0 0.0
        %280 = vmatprep.mubr.f32.mxu0 0.0
        %281 = vmatmul.mubr.f32.gmra.mxu0 %v210
        %v282 = vpop.f32.mrf.mxu0
        %v283 = vadd.f32 0.0, %v282
        %v284 = vpop.f32.mrf.mxu0
        %285 = vdwg.mxu0
        %v286 = vmul.f32 %v283, %v201
        %vm287 = vcmask 261120
        %v288 = vsel %vm287, %v286, 0.0
        %289 = vadd.xlane.f32.xlu0 %v288
        %v290 = vpop.xlane.xlu0 %289
        %v291 = vlaneseq
        %v292 = vand.u32 %v291, 127
        %vm293 = vcmp.eq.s32.totalorder %v292, 0
        %v294 = vsub.f32 %v283, %v290
        %296 = vrot.lane.b32.xlu0 %v283, 96
        %v297 = vpop.permute.xlu0 %296
        %300 = vrot.lane.b32.xlu0 %v294, 96
        %v301 = vpop.permute.xlu0 %300
        %v303 = vsel %vm293, %v297, %v301
        %vm304 = vcmask 64512
        %v306 = vsel %vm304, %v207, 0
        %308 = vmatprep.subr.mxu0 0.0
        %309 = vmatpush1.msra.mxu0 0.0
        %310 = vmatprep.subr.mxu0 0.0
        %311 = vmatpush1.msra.mxu0 0.0
        %312 = vmatprep.subr.mxu0 0.0
        %313 = vmatpush1.msra.mxu0 0.0
        %314 = vmatprep.subr.mxu0 0.0
        %315 = vmatpush1.msra.mxu0 0.0
        %316 = vmatprep.subr.mxu0 0.0
        %317 = vmatpush1.msra.mxu0 0.0
        %318 = vmatprep.subr.mxu0 0.0
        %319 = vmatpush1.msra.mxu0 0.0
        %320 = vmatprep.subr.mxu0 0.0
        %321 = vmatpush1.msra.mxu0 0.0
        %322 = vmatprep.subr.mxu0 0.0
        %323 = vmatpush1.msra.mxu0 0.0
        %324 = vmatprep.subr.mxu0 0.0
        %325 = vmatpush1.msra.mxu0 0.0
        %326 = vmatprep.subr.mxu0 0.0
        %327 = vmatpush1.msra.mxu0 0.0
        %328 = vmatprep.subr.mxu0 0.0
        %329 = vmatpush1.msra.mxu0 0.0
        %330 = vmatprep.subr.mxu0 0.0
        %331 = vmatpush1.msra.mxu0 0.0
        %332 = vmatprep.subr.mxu0 0.0
        %333 = vmatpush1.msra.mxu0 0.0
        %334 = vmatprep.subr.mxu0 0.0
        %335 = vmatpush1.msra.mxu0 0.0
        %336 = vmatprep.subr.mxu0 0.0
        %337 = vmatpush1.msra.mxu0 0.0
        %338 = vmatprep.subr.mxu0 0.0
        %339 = vmatpush1.msra.mxu0 %v303
        %340 = vmatprep.subr.mxu0 0.0
        %341 = vmatpush2.msra.mxu0 0.0
        %342 = vmatprep.subr.mxu0 0.0
        %343 = vmatpush2.msra.mxu0 0.0
        %344 = vmatprep.subr.mxu0 0.0
        %345 = vmatpush2.msra.mxu0 0.0
        %346 = vmatprep.subr.mxu0 0.0
        %347 = vmatpush2.msra.mxu0 0.0
        %348 = vmatprep.subr.mxu0 0.0
        %349 = vmatpush2.msra.mxu0 0.0
        %350 = vmatprep.subr.mxu0 0.0
        %351 = vmatpush2.msra.mxu0 0.0
        %352 = vmatprep.subr.mxu0 0.0
        %353 = vmatpush2.msra.mxu0 0.0
        %354 = vmatprep.subr.mxu0 0.0
        %355 = vmatpush2.msra.mxu0 0.0
        %356 = vmatprep.subr.mxu0 0.0
        %357 = vmatpush2.msra.mxu0 0.0
        %358 = vmatprep.subr.mxu0 0.0
        %359 = vmatpush2.msra.mxu0 0.0
        %360 = vmatprep.subr.mxu0 0.0
        %361 = vmatpush2.msra.mxu0 0.0
        %362 = vmatprep.subr.mxu0 0.0
        %363 = vmatpush2.msra.mxu0 0.0
        %364 = vmatprep.subr.mxu0 0.0
        %365 = vmatpush2.msra.mxu0 0.0
        %366 = vmatprep.subr.mxu0 0.0
        %367 = vmatpush2.msra.mxu0 0.0
        %368 = vmatprep.subr.mxu0 0.0
        %369 = vmatpush2.msra.mxu0 0.0
        %370 = vmatprep.subr.mxu0 0.0
        %371 = vmatpush2.msra.mxu0 0.0
        %372 = vmatprep.mubr.f32.mxu0 0.0
        %373 = vmatmul.mubr.f32.gmra.mxu0 %v306
        %v374 = vpop.f32.mrf.mxu0
        %v375 = vadd.f32 0.0, %v374
        %v376 = vpop.f32.mrf.mxu0
        %377 = vdwg.mxu0
        %378 = vset.pattern.permute.xlu0 8
        %379 = vperm.xlu0 %378, %v207
        %v380 = vpop.permute.xlu0 %379
        %v382 = vadd.f32 %v375, %v380
        %v383 = vmax.f32 %v375, 0.0
        %v384 = vrsqrt.pop %v383
        %v385 = vmul.f32 %v383, %v384
        %vm386 = vcmp.eq.f32.partialorder %v383, inf
        %v387 = vsel %vm386, %v383, %v385
        %vm388 = vcmp.eq.f32.partialorder %v383, 0.0
        %v389 = vand.u32 %v383, 2147483648
        %v390 = vsel %vm388, %v389, %v387
        %v391 = vsel %vm293, %v382, %v390
        %vm392 = vcmask 9216
        %393 = vst.msk [vmem:[%s200] sm:$0x3] %vm392, %v391
        %p394 = scmp.lt.s32.totalorder %s18, 3
        %s395 = scalar_select %p394, %s18, 3
        %s396 = smul.addr %s395, 2
        %s397 = scalar_lea.vmem %s3, %s396
        // Predicated region
        $region41: #{gpr_forward.1} parent=31 // pred_check
          %p398 = pneg %p104
        $region42: #{gpr_forward.1} parent=31 // pred_check_branch
          %400 = sbr.rel (%p398) target = $region44
        $region43: #{gpr_forward.1} parent=31 // pred_region
          _
        $region44: #{gpr_forward.1} parent=31 // pred_fallthru
          _
      $region32: #{gpr_forward.1} parent=5 // pred_fallthru
        _
      %p401 = scmp.le.s32.totalorder 2, %s13
      // Predicated region
      $region45: #{gpr_forward.1} parent=5 // pred_check
        %p402 = pneg %p401
      $region46: #{gpr_forward.1} parent=5 // pred_check_branch
        %404 = sbr.rel (%p402) target = $region48
      $region47: #{gpr_forward.1} parent=5 // pred_region
        %s405 = ssub.s32 %s13, 2
        // Predicated region
        $region49: #{gpr_forward.1} parent=47 // pred_check
          %p406 = pneg %p110
        $region50: #{gpr_forward.1} parent=47 // pred_check_branch
          %408 = sbr.rel (%p406) target = $region52
        $region51: #{gpr_forward.1} parent=47 // pred_region
          %p409 = scmp.lt.s32.totalorder %s19, 3
          %s410 = scalar_select %p409, %s19, 3
          %s411 = smul.addr %s410, 2
          %s412 = scalar_lea.vmem %s3, %s411
        $region52: #{gpr_forward.1} parent=47 // pred_fallthru
          _
      $region48: #{gpr_forward.1} parent=5 // pred_fallthru
        _
    $region6: #{gpr_forward.1} parent=1 // loop_footer
      %s17 = sadd.s32 1, %s13
    $region7: #{gpr_forward.1} parent=1 // loop_footer_branch
      %12 = sbr.rel target = $region3
    $region8: #{gpr_forward.1} parent=1 // loop_exit
      _
    %413 = vsyncpa [#allocation3], 1
    %s414 = scalar_lea.sflag [#allocation3], 1
    %415 = vsyncpa %s414, 1
    %416 = vsyncpa [#allocation5], 1

</llo_original>
